<compile_context>
chip_gen: v7x
topology: tpu7x:2x2x1
jax: 0.10.0
libtpu: 0.0.40
codegen_flags: <defaults>
</compile_context>

<pallas_src>
import functools

import jax
import jax.numpy as jnp
from jax.experimental import pallas as pl
from jax.experimental.pallas import tpu as pltpu

_NEG_BIG = -1e30  # finite "-inf" init for the running max (avoids inf-inf NaN)


def _round_up(x, m):
    return ((x + m - 1) // m) * m


def _ce_kernel(logits_ref, targets_ref, out_ref, m_sc, l_sc, t_sc, *,
               num_classes, tc):
    # Grid: (batch tiles [parallel], class tiles [arbitrary, innermost reduction]).
    j = pl.program_id(1)
    nj = pl.num_programs(1)

    @pl.when(j == 0)
    def _init():
        m_sc[...] = jnp.full_like(m_sc, _NEG_BIG)
        l_sc[...] = jnp.zeros_like(l_sc)
        t_sc[...] = jnp.zeros_like(t_sc)

    # Tile-local target column: (TB,1) int op instead of shifting a (TB,TC) iota.
    tgt_local = targets_ref[...] - j * tc

    def step(mask_tail):
        logits = logits_ref[...].astype(jnp.float32)             # (TB, TC) f32
        tb, tcc = logits.shape
        col = jax.lax.broadcasted_iota(jnp.int32, (tb, tcc), 1)  # j-independent
        if mask_tail:
            # Only the last class tile can be ragged: kill out-of-range columns
            # so OOB garbage never reaches the max / exp (-inf -> exp == 0 exactly).
            rem = num_classes - j * tc
            logits = jnp.where(col < rem, logits, -jnp.inf)

        # Online log-sum-exp update (f32 running state).
        m_prev = m_sc[...]
        m_new = jnp.maximum(m_prev, jnp.max(logits, axis=-1, keepdims=True))
        l_sc[...] = (jnp.exp(m_prev - m_new) * l_sc[...]
                     + jnp.sum(jnp.exp(logits - m_new), axis=-1, keepdims=True))
        m_sc[...] = m_new

        # Target-logit pickup: contributes exactly once, in the tile holding it.
        t_sc[...] += jnp.sum(jnp.where(col == tgt_local, logits, 0.0),
                             axis=-1, keepdims=True)

    @pl.when(j < nj - 1)
    def _full_tile():          # no masking cost on interior class tiles
        step(mask_tail=False)

    @pl.when(j == nj - 1)
    def _last_tile():          # masked tail + finalize
        step(mask_tail=True)
        out_ref[...] = (m_sc[...] + jnp.log(l_sc[...])) - t_sc[...]   # per-row NLL


def _choose_tiles(B, C, *, tb_max, tc_max, block_bytes_target):
    SUB, LANE = 8, 128
    # Class tile: take the full class dim when it fits (block == full dim is
    # always legal, even if unaligned); otherwise a 128-aligned tile whose
    # ragged tail is masked in-kernel.
    TC = C if C <= tc_max else max(LANE, (tc_max // LANE) * LANE)
    lanes = _round_up(TC, LANE)

    # Batch tile: as large as fits the per-buffer byte target (f32 accounting).
    tb_fit = max(SUB, (block_bytes_target // (lanes * 4)) // SUB * SUB)
    TB = min(tb_max, tb_fit, _round_up(B, SUB))

    # v7x megacore: ensure the "parallel" batch axis has >= 2 tiles whenever the
    # batch is large enough to split (harmless on 1-TC chips).
    if B > SUB and pl.cdiv(B, TB) < 2:
        TB = _round_up(pl.cdiv(B, 2), SUB)
    return TB, TC


def cross_entropy_loss(predictions, targets, *, tb_max=1024, tc_max=4096,
                       block_bytes_target=8 << 20):
    """Mean cross-entropy over (B, C) logits and (B,) integer labels.

    Matches torch.nn.CrossEntropyLoss() defaults (mean reduction, class-index
    targets).  Feed bf16 logits directly when the producing matmul is bf16 --
    the kernel upcasts per tile, so no wrapper-side upcast is needed.
    """
    # TODO(synk): ignore_index / class weights / label_smoothing not implemented
    # (the reference module uses nn.CrossEntropyLoss() defaults).
    B, C = predictions.shape
    TB, TC = _choose_tiles(B, C, tb_max=tb_max, tc_max=tc_max,
                           block_bytes_target=block_bytes_target)
    grid = (pl.cdiv(B, TB), pl.cdiv(C, TC))

    targets2d = targets.astype(jnp.int32).reshape(B, 1)

    # VMEM budget sized to need: double-buffered logits block + f32 compute
    # temps + small per-row state + headroom (never the full physical VMEM).
    itemsize = jnp.dtype(predictions.dtype).itemsize
    lanes = _round_up(TC, 128)
    blk_in = TB * lanes * itemsize
    blk_f32 = TB * lanes * 4
    vmem_limit = int(min(max(2 * blk_in + 4 * blk_f32 + (2 << 20), 16 << 20),
                         56 << 20))

    kernel = functools.partial(_ce_kernel, num_classes=C, tc=TC)
    per_row = pl.pallas_call(
        kernel,
        out_shape=jax.ShapeDtypeStruct((B, 1), jnp.float32),
        grid_spec=pltpu.PrefetchScalarGridSpec(
            num_scalar_prefetch=0,
            grid=grid,
            in_specs=[
                pl.BlockSpec((TB, TC), lambda i, j: (i, j)),   # logits tile
                pl.BlockSpec((TB, 1), lambda i, j: (i, 0)),    # targets (resident over j)
            ],
            out_specs=pl.BlockSpec((TB, 1), lambda i, j: (i, 0)),
            scratch_shapes=[
                pltpu.VMEM((TB, 1), jnp.float32),   # running max
                pltpu.VMEM((TB, 1), jnp.float32),   # running sum-exp
                pltpu.VMEM((TB, 1), jnp.float32),   # target-logit accumulator
            ],
        ),
        compiler_params=pltpu.CompilerParams(
            dimension_semantics=("parallel", "arbitrary"),
            vmem_limit_bytes=vmem_limit,
        ),
        cost_estimate=pl.CostEstimate(
            flops=6 * B * C,
            transcendentals=B * C,
            bytes_accessed=B * C * itemsize + 8 * B,
        ),
    )(predictions, targets2d)

    # All B rows are valid (OOB rows were never written back); mean reduction.
    return jnp.mean(per_row[:, 0])


def _reference(predictions, targets):
    return jnp.mean(
        jax.nn.logsumexp(predictions.astype(jnp.float32), axis=-1)
        - jnp.take_along_axis(predictions.astype(jnp.float32),
                              targets[:, None], axis=-1)[:, 0]
    )


if __name__ == "__main__":
    key = jax.random.PRNGKey(0)
    k1, k2, k3, k4 = jax.random.split(key, 4)

    # Case 1: shapes implied by the module's forward (batch, num_classes).
    batch, num_classes = 8, 32
    predictions = jax.random.normal(k1, (batch, num_classes), dtype=jnp.float32)
    targets = jax.random.randint(k2, (batch,), 0, num_classes, dtype=jnp.int32)
    loss = cross_entropy_loss(predictions, targets)
    jax.block_until_ready(loss)
    assert jnp.allclose(loss, _reference(predictions, targets), atol=1e-5), loss

    # Case 2: ragged batch + ragged class edge + multiple class tiles (forces the
    # in-kernel tail mask and the online multi-tile LSE path).
    b2, c2 = 13, 300
    preds2 = jax.random.normal(k3, (b2, c2), dtype=jnp.float32)
    tgts2 = jax.random.randint(k4, (b2,), 0, c2, dtype=jnp.int32)
    loss2 = cross_entropy_loss(preds2, tgts2, tb_max=8, tc_max=128)
    jax.block_until_ready(loss2)
    assert jnp.allclose(loss2, _reference(preds2, tgts2), atol=1e-5), loss2

    print("KERNEL_OK")
</pallas_src>

<mosaic_0001>
module attributes {stable_mosaic.version = 11 : i64} {
  func.func @_ce_kernel(%arg0: i32, %arg1: i32, %arg2: memref<8x32xf32, #tpu.memory_space<vmem>>, %arg3: memref<8x1xi32, #tpu.memory_space<vmem>>, %arg4: memref<8x1xf32, #tpu.memory_space<vmem>>, %arg5: memref<8x1xf32, #tpu.memory_space<vmem>>, %arg6: memref<8x1xf32, #tpu.memory_space<vmem>>, %arg7: memref<8x1xf32, #tpu.memory_space<vmem>>) attributes {dimension_semantics = [#tpu.dimension_semantics<parallel>, #tpu.dimension_semantics<arbitrary>], iteration_bounds = array<i64: 1, 1>, scalar_prefetch = 0 : i64, scratch_operands = 3 : i64, tpu.core_type = #tpu.core_type<tc>, window_params = [{transform_indices = @transform_0, window_bounds = array<i64: 8, 32>}, {transform_indices = @transform_1, window_bounds = array<i64: 8, 1>}, {transform_indices = @transform_2, window_bounds = array<i64: 8, 1>}]} {
    %c0_i32 = arith.constant 0 : i32
    %0 = arith.cmpi eq, %arg1, %c0_i32 : i32
    %1 = arith.extui %0 : i1 to i32
    %c0_i32_0 = arith.constant 0 : i32
    %2 = arith.cmpi ne, %1, %c0_i32_0 : i32
    scf.if %2 {
      %cst = arith.constant -1.000000e+30 : f32
      %13 = vector.broadcast %cst : f32 to vector<8x1xf32>
      %c0_6 = arith.constant 0 : index
      %c0_7 = arith.constant 0 : index
      %14 = vector.load %arg5[%c0_6, %c0_7] : memref<8x1xf32, #tpu.memory_space<vmem>>, vector<8x1xf32>
      tpu.vector_store %arg5[%c0_6, %c0_7], %13 {strides = array<i32>} : memref<8x1xf32, #tpu.memory_space<vmem>>, vector<8x1xf32>,
      %cst_8 = arith.constant 0.000000e+00 : f32
      %15 = vector.broadcast %cst_8 : f32 to vector<8x1xf32>
      %c0_9 = arith.constant 0 : index
      %c0_10 = arith.constant 0 : index
      %16 = vector.load %arg6[%c0_9, %c0_10] : memref<8x1xf32, #tpu.memory_space<vmem>>, vector<8x1xf32>
      tpu.vector_store %arg6[%c0_9, %c0_10], %15 {strides = array<i32>} : memref<8x1xf32, #tpu.memory_space<vmem>>, vector<8x1xf32>,
      %cst_11 = arith.constant 0.000000e+00 : f32
      %17 = vector.broadcast %cst_11 : f32 to vector<8x1xf32>
      %c0_12 = arith.constant 0 : index
      %c0_13 = arith.constant 0 : index
      %18 = vector.load %arg7[%c0_12, %c0_13] : memref<8x1xf32, #tpu.memory_space<vmem>>, vector<8x1xf32>
      tpu.vector_store %arg7[%c0_12, %c0_13], %17 {strides = array<i32>} : memref<8x1xf32, #tpu.memory_space<vmem>>, vector<8x1xf32>,
    } else {
    }
    %c0 = arith.constant 0 : index
    %c0_1 = arith.constant 0 : index
    %3 = vector.load %arg3[%c0, %c0_1] : memref<8x1xi32, #tpu.memory_space<vmem>>, vector<8x1xi32>
    %c32_i32 = arith.constant 32 : i32
    %4 = arith.muli %arg1, %c32_i32 : i32
    %5 = vector.broadcast %4 : i32 to vector<8x1xi32>
    %6 = arith.subi %3, %5 : vector<8x1xi32>
    %c0_i32_2 = arith.constant 0 : i32
    %7 = arith.cmpi slt, %arg1, %c0_i32_2 : i32
    %8 = arith.extui %7 : i1 to i32
    %c0_i32_3 = arith.constant 0 : i32
    %9 = arith.cmpi ne, %8, %c0_i32_3 : i32
    scf.if %9 {
      %c0_6 = arith.constant 0 : index
      %c0_7 = arith.constant 0 : index
      %13 = vector.load %arg2[%c0_6, %c0_7] : memref<8x32xf32, #tpu.memory_space<vmem>>, vector<8x32xf32>
      %14 = tpu.iota {dimensions = array<i32: 1>} : vector<8x32xi32>
      %c0_8 = arith.constant 0 : index
      %c0_9 = arith.constant 0 : index
      %15 = vector.load %arg5[%c0_8, %c0_9] : memref<8x1xf32, #tpu.memory_space<vmem>>, vector<8x1xf32>
      %cst = arith.constant dense<0xFF800000> : vector<8xf32>
      %16 = vector.multi_reduction <maximumf>, %13, %cst [1] : vector<8x32xf32> to vector<8xf32>
      %17 = vector.shape_cast %16 : vector<8xf32> to vector<8x1xf32>
      %18 = arith.maximumf %15, %17 : vector<8x1xf32>
      %19 = arith.subf %15, %18 : vector<8x1xf32>
      %20 = math.exp %19 : vector<8x1xf32>
      %c0_10 = arith.constant 0 : index
      %c0_11 = arith.constant 0 : index
      %21 = vector.load %arg6[%c0_10, %c0_11] : memref<8x1xf32, #tpu.memory_space<vmem>>, vector<8x1xf32>
      %22 = arith.mulf %20, %21 : vector<8x1xf32>
      %23 = vector.broadcast %18 : vector<8x1xf32> to vector<8x32xf32>
      %24 = arith.subf %13, %23 : vector<8x32xf32>
      %25 = math.exp %24 : vector<8x32xf32>
      %cst_12 = arith.constant dense<0.000000e+00> : vector<8xf32>
      %26 = vector.multi_reduction <add>, %25, %cst_12 [1] : vector<8x32xf32> to vector<8xf32>
      %27 = vector.shape_cast %26 : vector<8xf32> to vector<8x1xf32>
      %28 = arith.addf %22, %27 : vector<8x1xf32>
      %c0_13 = arith.constant 0 : index
      %c0_14 = arith.constant 0 : index
      %29 = vector.load %arg6[%c0_13, %c0_14] : memref<8x1xf32, #tpu.memory_space<vmem>>, vector<8x1xf32>
      tpu.vector_store %arg6[%c0_13, %c0_14], %28 {strides = array<i32>} : memref<8x1xf32, #tpu.memory_space<vmem>>, vector<8x1xf32>,
      %c0_15 = arith.constant 0 : index
      %c0_16 = arith.constant 0 : index
      %30 = vector.load %arg5[%c0_15, %c0_16] : memref<8x1xf32, #tpu.memory_space<vmem>>, vector<8x1xf32>
      tpu.vector_store %arg5[%c0_15, %c0_16], %18 {strides = array<i32>} : memref<8x1xf32, #tpu.memory_space<vmem>>, vector<8x1xf32>,
      %c0_17 = arith.constant 0 : index
      %c0_18 = arith.constant 0 : index
      %31 = vector.load %arg7[%c0_17, %c0_18] : memref<8x1xf32, #tpu.memory_space<vmem>>, vector<8x1xf32>
      %32 = vector.broadcast %6 : vector<8x1xi32> to vector<8x32xi32>
      %33 = arith.cmpi eq, %14, %32 : vector<8x32xi32>
      %cst_19 = arith.constant 0.000000e+00 : f32
      %34 = vector.broadcast %cst_19 : f32 to vector<8x32xf32>
      %35 = arith.select %33, %13, %34 : vector<8x32xi1>, vector<8x32xf32>
      %cst_20 = arith.constant dense<0.000000e+00> : vector<8xf32>
      %36 = vector.multi_reduction <add>, %35, %cst_20 [1] : vector<8x32xf32> to vector<8xf32>
      %37 = vector.shape_cast %36 : vector<8xf32> to vector<8x1xf32>
      %38 = arith.addf %31, %37 : vector<8x1xf32>
      %c0_21 = arith.constant 0 : index
      %c0_22 = arith.constant 0 : index
      %39 = vector.load %arg7[%c0_21, %c0_22] : memref<8x1xf32, #tpu.memory_space<vmem>>, vector<8x1xf32>
      tpu.vector_store %arg7[%c0_21, %c0_22], %38 {strides = array<i32>} : memref<8x1xf32, #tpu.memory_space<vmem>>, vector<8x1xf32>,
    } else {
    }
    %c0_i32_4 = arith.constant 0 : i32
    %10 = arith.cmpi eq, %arg1, %c0_i32_4 : i32
    %11 = arith.extui %10 : i1 to i32
    %c0_i32_5 = arith.constant 0 : i32
    %12 = arith.cmpi ne, %11, %c0_i32_5 : i32
    scf.if %12 {
      %c0_6 = arith.constant 0 : index
      %c0_7 = arith.constant 0 : index
      %13 = vector.load %arg2[%c0_6, %c0_7] : memref<8x32xf32, #tpu.memory_space<vmem>>, vector<8x32xf32>
      %14 = tpu.iota {dimensions = array<i32: 1>} : vector<8x32xi32>
      %c32_i32_8 = arith.constant 32 : i32
      %15 = arith.muli %arg1, %c32_i32_8 : i32
      %c32_i32_9 = arith.constant 32 : i32
      %16 = arith.subi %c32_i32_9, %15 : i32
      %17 = vector.broadcast %16 : i32 to vector<8x32xi32>
      %18 = arith.cmpi slt, %14, %17 : vector<8x32xi32>
      %cst = arith.constant 0xFF800000 : f32
      %19 = vector.broadcast %cst : f32 to vector<8x32xf32>
      %20 = arith.select %18, %13, %19 : vector<8x32xi1>, vector<8x32xf32>
      %c0_10 = arith.constant 0 : index
      %c0_11 = arith.constant 0 : index
      %21 = vector.load %arg5[%c0_10, %c0_11] : memref<8x1xf32, #tpu.memory_space<vmem>>, vector<8x1xf32>
      %cst_12 = arith.constant dense<0xFF800000> : vector<8xf32>
      %22 = vector.multi_reduction <maximumf>, %20, %cst_12 [1] : vector<8x32xf32> to vector<8xf32>
      %23 = vector.shape_cast %22 : vector<8xf32> to vector<8x1xf32>
      %24 = arith.maximumf %21, %23 : vector<8x1xf32>
      %25 = arith.subf %21, %24 : vector<8x1xf32>
      %26 = math.exp %25 : vector<8x1xf32>
      %c0_13 = arith.constant 0 : index
      %c0_14 = arith.constant 0 : index
      %27 = vector.load %arg6[%c0_13, %c0_14] : memref<8x1xf32, #tpu.memory_space<vmem>>, vector<8x1xf32>
      %28 = arith.mulf %26, %27 : vector<8x1xf32>
      %29 = vector.broadcast %24 : vector<8x1xf32> to vector<8x32xf32>
      %30 = arith.subf %20, %29 : vector<8x32xf32>
      %31 = math.exp %30 : vector<8x32xf32>
      %cst_15 = arith.constant dense<0.000000e+00> : vector<8xf32>
      %32 = vector.multi_reduction <add>, %31, %cst_15 [1] : vector<8x32xf32> to vector<8xf32>
      %33 = vector.shape_cast %32 : vector<8xf32> to vector<8x1xf32>
      %34 = arith.addf %28, %33 : vector<8x1xf32>
      %c0_16 = arith.constant 0 : index
      %c0_17 = arith.constant 0 : index
      %35 = vector.load %arg6[%c0_16, %c0_17] : memref<8x1xf32, #tpu.memory_space<vmem>>, vector<8x1xf32>
      tpu.vector_store %arg6[%c0_16, %c0_17], %34 {strides = array<i32>} : memref<8x1xf32, #tpu.memory_space<vmem>>, vector<8x1xf32>,
      %c0_18 = arith.constant 0 : index
      %c0_19 = arith.constant 0 : index
      %36 = vector.load %arg5[%c0_18, %c0_19] : memref<8x1xf32, #tpu.memory_space<vmem>>, vector<8x1xf32>
      tpu.vector_store %arg5[%c0_18, %c0_19], %24 {strides = array<i32>} : memref<8x1xf32, #tpu.memory_space<vmem>>, vector<8x1xf32>,
      %c0_20 = arith.constant 0 : index
      %c0_21 = arith.constant 0 : index
      %37 = vector.load %arg7[%c0_20, %c0_21] : memref<8x1xf32, #tpu.memory_space<vmem>>, vector<8x1xf32>
      %38 = vector.broadcast %6 : vector<8x1xi32> to vector<8x32xi32>
      %39 = arith.cmpi eq, %14, %38 : vector<8x32xi32>
      %cst_22 = arith.constant 0.000000e+00 : f32
      %40 = vector.broadcast %cst_22 : f32 to vector<8x32xf32>
      %41 = arith.select %39, %20, %40 : vector<8x32xi1>, vector<8x32xf32>
      %cst_23 = arith.constant dense<0.000000e+00> : vector<8xf32>
      %42 = vector.multi_reduction <add>, %41, %cst_23 [1] : vector<8x32xf32> to vector<8xf32>
      %43 = vector.shape_cast %42 : vector<8xf32> to vector<8x1xf32>
      %44 = arith.addf %37, %43 : vector<8x1xf32>
      %c0_24 = arith.constant 0 : index
      %c0_25 = arith.constant 0 : index
      %45 = vector.load %arg7[%c0_24, %c0_25] : memref<8x1xf32, #tpu.memory_space<vmem>>, vector<8x1xf32>
      tpu.vector_store %arg7[%c0_24, %c0_25], %44 {strides = array<i32>} : memref<8x1xf32, #tpu.memory_space<vmem>>, vector<8x1xf32>,
      %c0_26 = arith.constant 0 : index
      %c0_27 = arith.constant 0 : index
      %46 = vector.load %arg5[%c0_26, %c0_27] : memref<8x1xf32, #tpu.memory_space<vmem>>, vector<8x1xf32>
      %c0_28 = arith.constant 0 : index
      %c0_29 = arith.constant 0 : index
      %47 = vector.load %arg6[%c0_28, %c0_29] : memref<8x1xf32, #tpu.memory_space<vmem>>, vector<8x1xf32>
      %48 = math.log %47 : vector<8x1xf32>
      %49 = arith.addf %46, %48 : vector<8x1xf32>
      %c0_30 = arith.constant 0 : index
      %c0_31 = arith.constant 0 : index
      %50 = vector.load %arg7[%c0_30, %c0_31] : memref<8x1xf32, #tpu.memory_space<vmem>>, vector<8x1xf32>
      %51 = arith.subf %49, %50 : vector<8x1xf32>
      %c0_32 = arith.constant 0 : index
      %c0_33 = arith.constant 0 : index
      %52 = vector.load %arg4[%c0_32, %c0_33] : memref<8x1xf32, #tpu.memory_space<vmem>>, vector<8x1xf32>
      tpu.vector_store %arg4[%c0_32, %c0_33], %51 {strides = array<i32>} : memref<8x1xf32, #tpu.memory_space<vmem>>, vector<8x1xf32>,
    } else {
    }
    return
  }
  func.func @transform_0(%arg0: i32, %arg1: i32) -> (i32, i32) {
    %c0_i32 = arith.constant 0 : i32
    return %arg0, %arg1 : i32, i32
  }
  func.func @transform_1(%arg0: i32, %arg1: i32) -> (i32, i32) {
    %c0_i32 = arith.constant 0 : i32
    %c0_i32_0 = arith.constant 0 : i32
    return %arg0, %c0_i32 : i32, i32
  }
  func.func @transform_2(%arg0: i32, %arg1: i32) -> (i32, i32) {
    %c0_i32 = arith.constant 0 : i32
    %c0_i32_0 = arith.constant 0 : i32
    return %arg0, %c0_i32 : i32, i32
  }
}

</mosaic_0001>

<llo_original>
// kernel: tpu_custom_call.1
$region0: #{tpu_custom_call.1}
  #allocation0 [shape = 'u32[]', space=smem, size = 0x4, offset = 0x4, fixed_abs, tag = 'smem constant byte address 0x4 - core index']
  #allocation1 [shape = 'u32[144,128]{1,0:T(1,128)}', space=vmem, size = 0x12000, scoped, tag = 'internal scratch']
  #allocation2 [shape = 'f32[8,1]{1,0:T(8,128)}', space=vmem, size = 0x1000, scoped, tag = 'scratch operand']
  #allocation3 [shape = 'f32[8,1]{1,0:T(8,128)}', space=vmem, size = 0x1000, scoped, tag = 'scratch operand']
  #allocation4 [shape = 'f32[8,1]{1,0:T(8,128)}', space=vmem, size = 0x1000, scoped, tag = 'scratch operand']
  %s0 = inlined_call_operand.vmem [shape: f32[8,32], index: 0, kind: input, shape index: {}]
  %s1 = inlined_call_operand.vmem [shape: s32[8,1], index: 1, kind: input, shape index: {}]
  %s2 = inlined_call_operand.vmem [shape: f32[8,1], index: 2, kind: output, shape index: {}]
  %s3 = sld [smem:[#allocation0]]
  $region30: #{tpu_custom_call.1} parent=0
    _
  %s5 = ssub.s32 1, %s3
  %s6 = scalar_select 0, %s5, %s3
  // Predicated region
  $region2: #{tpu_custom_call.1} parent=0 // pred_check
    _
  $region3: #{tpu_custom_call.1} parent=0 // pred_check_branch
    %8 = sbr.rel (0) target = $region5
  $region4: #{tpu_custom_call.1} parent=0 // pred_region
    _
  $region5: #{tpu_custom_call.1} parent=0 // pred_fallthru
    _
  // Predicated region
  $region6: #{tpu_custom_call.1} parent=0 // pred_check
    _
  $region7: #{tpu_custom_call.1} parent=0 // pred_check_branch
    %10 = sbr.rel (0) target = $region9
  $region8: #{tpu_custom_call.1} parent=0 // pred_region
    _
  $region9: #{tpu_custom_call.1} parent=0 // pred_fallthru
    _
  %p11 = scmp.eq.s32.totalorder 0, 0
  // Predicated region
  $region10: #{tpu_custom_call.1} parent=0 // pred_check
    %p12 = pneg %p11
  $region11: #{tpu_custom_call.1} parent=0 // pred_check_branch
    %14 = sbr.rel (%p12) target = $region13
  $region12: #{tpu_custom_call.1} parent=0 // pred_region
    %vm15 = vcmask 7168
    %16 = vst.msk [vmem:[#allocation2] sm:$0xff] %vm15, -1e+30
    %17 = vst.msk [vmem:[#allocation3] sm:$0xff] %vm15, 0.0
    %18 = vst.msk [vmem:[#allocation4] sm:$0xff] %vm15, 0.0
  $region13: #{tpu_custom_call.1} parent=0 // pred_fallthru
    _
  %v19 = vld [vmem:[%s1] sm:$0xff]
  %s20 = smul.u32 0, 32
  %v21 = vstv %s20
  %v22 = vsub.s32 %v19, %v21
  %p23 = scmp.lt.s32.totalorder 0, 0
  // Predicated region
  $region14: #{tpu_custom_call.1} parent=0 // pred_check
    %p24 = pneg %p23
  $region15: #{tpu_custom_call.1} parent=0 // pred_check_branch
    %26 = sbr.rel (%p24) target = $region17
  $region16: #{tpu_custom_call.1} parent=0 // pred_region
    %v27 = vld [vmem:[%s0] sm:$0xff]
    %v28 = vlaneseq
    %v29 = vand.u32 %v28, 127
    %v30 = vld [vmem:[#allocation2] sm:$0xff]
    %vm31 = vcmask 261120
    %v32 = vsel %vm31, %v27, -inf
    %33 = vmax.xlane.f32.xlu0 %v32
    %v34 = vpop.xlane.xlu0 %33
    %v35 = vmax.f32 %v30, %v34
    %v36 = vsub.f32 %v30, %v35
    %v37 = vmul.f32 %v36, 1.442695
    %v38 = vpow.pop %v37
    %v39 = vld [vmem:[#allocation3] sm:$0xff]
    %v40 = vmul.f32 %v38, %v39
    %42 = vset.pattern.permute.xlu0 0
    %43 = vperm.xlu0 %42, %v35
    %v44 = vpop.permute.xlu0 %43
    %v46 = vsub.f32 %v27, %v44
    %v47 = vmul.f32 %v46, 1.442695
    %v48 = vpow.pop %v47
    %v49 = vsel %vm31, %v48, 0.0
    %50 = vadd.xlane.f32.xlu0 %v49
    %v51 = vpop.xlane.xlu0 %50
    %v52 = vadd.f32 %v40, %v51
    %vm53 = vcmask 7168
    %54 = vst.msk [vmem:[#allocation3] sm:$0xff] %vm53, %v52
    %55 = vst.msk [vmem:[#allocation2] sm:$0xff] %vm53, %v35
    %v56 = vld [vmem:[#allocation4] sm:$0xff]
    %57 = vset.pattern.permute.xlu0 0
    %58 = vperm.xlu0 %57, %v22
    %v59 = vpop.permute.xlu0 %58
    %vm60 = vcmp.eq.s32.totalorder %v29, %v59
    %v61 = vsel %vm60, %v27, 0.0
    %v62 = vsel %vm31, %v61, 0.0
    %63 = vadd.xlane.f32.xlu0 %v62
    %v64 = vpop.xlane.xlu0 %63
    %v65 = vadd.f32 %v56, %v64
    %66 = vst.msk [vmem:[#allocation4] sm:$0xff] %vm53, %v65
  $region17: #{tpu_custom_call.1} parent=0 // pred_fallthru
    _
  // Predicated region
  $region18: #{tpu_custom_call.1} parent=0 // pred_check
    %p67 = pneg %p11
  $region19: #{tpu_custom_call.1} parent=0 // pred_check_branch
    %69 = sbr.rel (%p67) target = $region21
  $region20: #{tpu_custom_call.1} parent=0 // pred_region
    %v70 = vld [vmem:[%s0] sm:$0xff]
    %v71 = vlaneseq
    %v72 = vand.u32 %v71, 127
    %s73 = ssub.s32 32, %s20
    %v74 = vstv %s73
    %vm75 = vcmp.lt.s32.totalorder %v72, %v74
    %v76 = vsel %vm75, %v70, -inf
    %v77 = vld [vmem:[#allocation2] sm:$0xff]
    %vm78 = vcmask 261120
    %v79 = vsel %vm78, %v76, -inf
    %80 = vmax.xlane.f32.xlu0 %v79
    %v81 = vpop.xlane.xlu0 %80
    %v82 = vmax.f32 %v77, %v81
    %v83 = vsub.f32 %v77, %v82
    %v84 = vmul.f32 %v83, 1.442695
    %v85 = vpow.pop %v84
    %v86 = vld [vmem:[#allocation3] sm:$0xff]
    %v87 = vmul.f32 %v85, %v86
    %89 = vset.pattern.permute.xlu0 0
    %90 = vperm.xlu0 %89, %v82
    %v91 = vpop.permute.xlu0 %90
    %v93 = vsub.f32 %v76, %v91
    %v94 = vmul.f32 %v93, 1.442695
    %v95 = vpow.pop %v94
    %v96 = vsel %vm78, %v95, 0.0
    %97 = vadd.xlane.f32.xlu0 %v96
    %v98 = vpop.xlane.xlu0 %97
    %v99 = vadd.f32 %v87, %v98
    %vm100 = vcmask 7168
    %101 = vst.msk [vmem:[#allocation3] sm:$0xff] %vm100, %v99
    %102 = vst.msk [vmem:[#allocation2] sm:$0xff] %vm100, %v82
    %v103 = vld [vmem:[#allocation4] sm:$0xff]
    %104 = vset.pattern.permute.xlu0 0
    %105 = vperm.xlu0 %104, %v22
    %v106 = vpop.permute.xlu0 %105
    %vm107 = vcmp.eq.s32.totalorder %v72, %v106
    %v108 = vsel %vm107, %v76, 0.0
    %v109 = vsel %vm78, %v108, 0.0
    %110 = vadd.xlane.f32.xlu0 %v109
    %v111 = vpop.xlane.xlu0 %110
    %v112 = vadd.f32 %v103, %v111
    %113 = vst.msk [vmem:[#allocation4] sm:$0xff] %vm100, %v112
    %v114 = vld [vmem:[#allocation2] sm:$0xff]
    %v115 = vld [vmem:[#allocation3] sm:$0xff]
    %v116 = vlog2.pop %v115
    %v117 = vmul.f32 %v116, 0.6931472
    %v118 = vadd.f32 %v114, %v117
    %v119 = vld [vmem:[#allocation4] sm:$0xff]
    %v120 = vsub.f32 %v118, %v119
    %121 = vst.msk [vmem:[%s2] sm:$0xff] %vm100, %v120
  $region21: #{tpu_custom_call.1} parent=0 // pred_fallthru
    _
  // Predicated region
  $region22: #{tpu_custom_call.1} parent=0 // pred_check
    _
  $region23: #{tpu_custom_call.1} parent=0 // pred_check_branch
    %123 = sbr.rel (0) target = $region25
  $region24: #{tpu_custom_call.1} parent=0 // pred_region
    _
  $region25: #{tpu_custom_call.1} parent=0 // pred_fallthru
    _
  // Predicated region
  $region26: #{tpu_custom_call.1} parent=0 // pred_check
    _
  $region27: #{tpu_custom_call.1} parent=0 // pred_check_branch
    %125 = sbr.rel (0) target = $region29
  $region28: #{tpu_custom_call.1} parent=0 // pred_region
    _
  $region29: #{tpu_custom_call.1} parent=0 // pred_fallthru
    _

</llo_original>
